<compile_context>
chip_gen: v5e
topology: v5e:2x2
jax: 0.10.0
libtpu: 0.0.40
codegen_flags: <defaults>
</compile_context>

<pallas_src>
import jax
import jax.numpy as jnp
import numpy as np
from jax.experimental import pallas as pl
from jax.experimental.pallas import tpu as pltpu


def swiglu_kernel(x_ref, w_ref, b_ref, beta_ref, o_ref):
    C = o_ref.shape[-1]
    x = x_ref[...]                                                    # (tm, C)
    # Fused gate+linear projection: one MXU push, lane width 2C.
    y = jnp.dot(x, w_ref[...], preferred_element_type=jnp.float32) + b_ref[...]  # (tm, 2C)
    gate = y[:, :C]
    lin = y[:, C:]
    beta = beta_ref[0]
    # swish(gate) = gate * sigmoid(beta * gate); the exp goes to the EUP slot.
    sig = 1.0 / (1.0 + jnp.exp(-beta * gate))
    o_ref[...] = (gate * sig * lin).astype(o_ref.dtype)


def prepare_swiglu_params(w_gate, b_gate, w_lin, b_lin, beta):
    """One-time parameter prep (hoisted out of the per-call hot path).

    nn.Linear stores weights as (out, in); pre-transpose and fuse the two
    projections into a single (C, 2C) matrix so the kernel does one x @ W.
    """
    w_fused = jnp.concatenate([w_gate.T, w_lin.T], axis=1).astype(jnp.float32)     # (C, 2C)
    b_fused = jnp.concatenate([b_gate, b_lin]).reshape(1, -1).astype(jnp.float32)  # (1, 2C)
    beta = jnp.asarray(beta, jnp.float32).reshape(1)                               # (1,)
    return w_fused, b_fused, beta


def swiglu(x, w_fused, b_fused, beta):
    """x: (..., C). Returns SwiGLU(x) with the same shape/dtype as x."""
    orig_shape = x.shape
    C = orig_shape[-1]
    x2d = x.reshape(-1, C)   # fold batch/seq into the matmul M dim (free row-major reshape)
    M = x2d.shape[0]

    # Row tile: one grid step for small problems; tile (parallel) for large M.
    if M >= 512 and M % 512 == 0:
        tm = 512
    elif M >= 256 and M % 256 == 0:
        tm = 256
    else:
        tm = M
    grid = (M // tm,)

    cost = pl.CostEstimate(
        flops=2 * M * C * (2 * C) + 6 * M * C,
        transcendentals=M * C,
        bytes_accessed=(x2d.size + w_fused.size + b_fused.size + M * C) * 4,
    )

    out = pl.pallas_call(
        swiglu_kernel,
        out_shape=jax.ShapeDtypeStruct((M, C), x.dtype),
        grid=grid,
        in_specs=[
            pl.BlockSpec((tm, C), lambda i: (i, 0)),                 # x rows
            pl.BlockSpec((C, 2 * C), lambda i: (0, 0)),              # fused weight (constant)
            pl.BlockSpec((1, 2 * C), lambda i: (0, 0)),              # fused bias (constant)
            pl.BlockSpec(memory_space=pltpu.MemorySpace.SMEM),       # beta scalar
        ],
        out_specs=pl.BlockSpec((tm, C), lambda i: (i, 0)),
        compiler_params=pltpu.CompilerParams(dimension_semantics=("parallel",)),
        cost_estimate=cost,
    )(x2d, w_fused, b_fused, beta)

    return out.reshape(orig_shape)


def swiglu_ref(x, w_gate, b_gate, w_lin, b_lin, beta):
    """Pure-JAX reference mirroring the PyTorch forward exactly."""
    g = x @ w_gate.T + b_gate
    swish_gate = g * jax.nn.sigmoid(beta * g)
    return swish_gate * (x @ w_lin.T + b_lin)


if __name__ == "__main__":
    # Small shapes consistent with the module: batch=2, seq=8, size (C) = 32.
    B, T, C = 2, 8, 32
    key = jax.random.PRNGKey(0)
    kx, kwg, kbg, kwl, kbl = jax.random.split(key, 5)

    x = jax.random.normal(kx, (B, T, C), dtype=jnp.float32)

    # nn.Linear layout: weight (out_features, in_features), bias (out_features,)
    w_gate = jax.random.normal(kwg, (C, C), dtype=jnp.float32) * 0.05
    b_gate = jax.random.normal(kbg, (C,), dtype=jnp.float32) * 0.05
    w_lin = jax.random.normal(kwl, (C, C), dtype=jnp.float32) * 0.05
    b_lin = jax.random.normal(kbl, (C,), dtype=jnp.float32) * 0.05
    beta = jnp.ones((1,), dtype=jnp.float32)      # nn.Parameter(torch.ones(1))

    w_fused, b_fused, beta_p = prepare_swiglu_params(w_gate, b_gate, w_lin, b_lin, beta)

    out = swiglu(x, w_fused, b_fused, beta_p)
    out = jax.block_until_ready(out)

    ref = swiglu_ref(x, w_gate, b_gate, w_lin, b_lin, beta)
    np.testing.assert_allclose(np.asarray(out), np.asarray(ref), rtol=1e-5, atol=1e-5)

    print("KERNEL_OK")
</pallas_src>

<mosaic_0001>
module attributes {stable_mosaic.version = 11 : i64} {
  func.func @swiglu_kernel(%arg0: i32, %arg1: memref<16x32xf32, #tpu.memory_space<vmem>>, %arg2: memref<32x64xf32, #tpu.memory_space<vmem>>, %arg3: memref<1x64xf32, #tpu.memory_space<vmem>>, %arg4: memref<1xf32, #tpu.memory_space<smem>>, %arg5: memref<16x32xf32, #tpu.memory_space<vmem>>) attributes {dimension_semantics = [#tpu.dimension_semantics<parallel>], iteration_bounds = array<i64: 1>, scalar_prefetch = 0 : i64, scratch_operands = 0 : i64, tpu.core_type = #tpu.core_type<tc>, window_params = [{transform_indices = @transform_0, window_bounds = array<i64: 16, 32>}, {pipeline_mode = #tpu.pipeline_mode<synchronous>, transform_indices = @transform_1, window_bounds = array<i64: 32, 64>}, {pipeline_mode = #tpu.pipeline_mode<synchronous>, transform_indices = @transform_2, window_bounds = array<i64: 1, 64>}, {transform_indices = @transform_3, window_bounds = array<i64: 1>}, {transform_indices = @transform_4, window_bounds = array<i64: 16, 32>}]} {
    %c0 = arith.constant 0 : index
    %c0_0 = arith.constant 0 : index
    %0 = vector.load %arg1[%c0, %c0_0] : memref<16x32xf32, #tpu.memory_space<vmem>>, vector<16x32xf32>
    %c0_1 = arith.constant 0 : index
    %c0_2 = arith.constant 0 : index
    %1 = vector.load %arg2[%c0_1, %c0_2] : memref<32x64xf32, #tpu.memory_space<vmem>>, vector<32x64xf32>
    %cst = arith.constant dense<0.000000e+00> : vector<16x64xf32>
    %2 = tpu.matmul %0, %1, %cst {dimension_numbers = #tpu.dot_dimension_numbers<[1], [0], [0], [1], [0, 0, 1, 1], [], []>} : vector<16x32xf32>, vector<32x64xf32>, vector<16x64xf32> -> vector<16x64xf32>
    %c0_3 = arith.constant 0 : index
    %c0_4 = arith.constant 0 : index
    %3 = vector.load %arg3[%c0_3, %c0_4] : memref<1x64xf32, #tpu.memory_space<vmem>>, vector<1x64xf32>
    %4 = vector.broadcast %3 : vector<1x64xf32> to vector<16x64xf32>
    %5 = arith.addf %2, %4 : vector<16x64xf32>
    %6 = vector.extract_strided_slice %5 {offsets = [0, 0], sizes = [16, 32], strides = [1, 1]} : vector<16x64xf32> to vector<16x32xf32>
    %7 = vector.extract_strided_slice %5 {offsets = [0, 32], sizes = [16, 32], strides = [1, 1]} : vector<16x64xf32> to vector<16x32xf32>
    %c0_5 = arith.constant 0 : index
    %8 = memref.load %arg4[%c0_5] : memref<1xf32, #tpu.memory_space<smem>>
    %cst_6 = arith.constant 0.000000e+00 : f32
    %9 = arith.subf %cst_6, %8 : f32
    %10 = vector.broadcast %9 : f32 to vector<16x32xf32>
    %11 = arith.mulf %10, %6 : vector<16x32xf32>
    %12 = math.exp %11 : vector<16x32xf32>
    %cst_7 = arith.constant 1.000000e+00 : f32
    %13 = vector.broadcast %cst_7 : f32 to vector<16x32xf32>
    %14 = arith.addf %13, %12 : vector<16x32xf32>
    %cst_8 = arith.constant 1.000000e+00 : f32
    %15 = vector.broadcast %cst_8 : f32 to vector<16x32xf32>
    %16 = arith.divf %15, %14 : vector<16x32xf32>
    %17 = arith.mulf %6, %16 : vector<16x32xf32>
    %18 = arith.mulf %17, %7 : vector<16x32xf32>
    %c0_9 = arith.constant 0 : index
    %c0_10 = arith.constant 0 : index
    %19 = vector.load %arg5[%c0_9, %c0_10] : memref<16x32xf32, #tpu.memory_space<vmem>>, vector<16x32xf32>
    tpu.vector_store %arg5[%c0_9, %c0_10], %18 {strides = array<i32>} : memref<16x32xf32, #tpu.memory_space<vmem>>, vector<16x32xf32>,
    return
  }
  func.func @transform_0(%arg0: i32) -> (i32, i32) {
    %c0_i32 = arith.constant 0 : i32
    %c0_i32_0 = arith.constant 0 : i32
    return %arg0, %c0_i32 : i32, i32
  }
  func.func @transform_1(%arg0: i32) -> (i32, i32) {
    %c0_i32 = arith.constant 0 : i32
    %c0_i32_0 = arith.constant 0 : i32
    %c0_i32_1 = arith.constant 0 : i32
    return %c0_i32, %c0_i32_0 : i32, i32
  }
  func.func @transform_2(%arg0: i32) -> (i32, i32) {
    %c0_i32 = arith.constant 0 : i32
    %c0_i32_0 = arith.constant 0 : i32
    %c0_i32_1 = arith.constant 0 : i32
    return %c0_i32, %c0_i32_0 : i32, i32
  }
  func.func @transform_3(%arg0: i32) -> i32 {
    %c0_i32 = arith.constant 0 : i32
    %c0_i32_0 = arith.constant 0 : i32
    return %c0_i32 : i32
  }
  func.func @transform_4(%arg0: i32) -> (i32, i32) {
    %c0_i32 = arith.constant 0 : i32
    %c0_i32_0 = arith.constant 0 : i32
    return %arg0, %c0_i32 : i32, i32
  }
}

</mosaic_0001>

<llo_original>
// kernel: tpu_custom_call.1
$region0: #{tpu_custom_call.1}
  #allocation0 [shape = 'u32[]', space=smem, size = 0x4, offset = 0x4, fixed_abs, tag = 'smem constant byte address 0x4 - core index']
  #allocation1 [shape = 'u32[72,128]{1,0:T(1,128)}', space=vmem, size = 0x9000, scoped, tag = 'internal scratch']
  #allocation2 [shape = 'f32[1]{0:T(128)S(6)}', space=smem, size = 0x200, scoped, tag = 'scoped memory for tpu_custom_call.1']
  %s0 = inlined_call_operand.hbm [shape: f32[16,32], index: 0, kind: input, shape index: {}]
  %s1 = inlined_call_operand.hbm [shape: f32[32,64], index: 1, kind: input, shape index: {}]
  %s2 = inlined_call_operand.vmem [shape: f32[1,64], index: 2, kind: input, shape index: {}]
  %s3 = inlined_call_operand.<no memory space> [shape: f32[1], index: 3, kind: input, shape index: {}]
  %s4 = inlined_call_operand.hbm [shape: f32[16,32], index: 4, kind: output, shape index: {}]
  %s5 = sld [smem:[#allocation0]]
  $region34: #{tpu_custom_call.1} parent=0
    _
  %s7 = ssub.s32 1, %s5
  %s8 = scalar_select 0, %s7, %s5
  %9 = sst [smem:[#allocation2]] %s3
  $region1: #{tpu_custom_call.1} parent=0
    #allocation3 [shape = 'u8[8192]{0}', space=vmem, size = 0x2000, scoped, tag = 'input window, operand 0, single buffered']
    #allocation4 [shape = 's32[1]{0}', space=sflag, size = 0x4, scoped, tag = 'scoped memory for tpu_custom_call.1']
    #allocation5 [shape = 's32[1]{0}', space=sflag, size = 0x4, scoped, tag = 'scoped memory for tpu_custom_call.1']
    #allocation6 [shape = 'u8[16384]{0}', space=vmem, size = 0x4000, scoped, tag = 'input window, operand 1, single buffered']
    #allocation7 [shape = 's32[1]{0}', space=sflag, size = 0x4, scoped, tag = 'scoped memory for tpu_custom_call.1']
    #allocation8 [shape = 'u8[8192]{0}', space=vmem, size = 0x2000, scoped, tag = 'output window, operand 0, single buffered']
    %10 = vsyncpa [#allocation4], 0
    %11 = vsyncpa [#allocation7], 0
    %12 = vsyncpa [#allocation5], 0
    // Predicated region
    $region2: #{tpu_custom_call.1} parent=1 // pred_check
      _
    $region3: #{tpu_custom_call.1} parent=1 // pred_check_branch
      %14 = sbr.rel (0) target = $region5
    $region4: #{tpu_custom_call.1} parent=1 // pred_region
      %16 = vsyncadd [#allocation4], 0
      %s17 = sshll.u32 %s0, 4
      %s18 = int_to_ptr.hbm [resolvable:$true] %s17
      %s19 = sshll.u32 [#allocation3], 4
      %s20 = int_to_ptr.vmem [resolvable:$true] %s19
      %25 = dma.hbm_to_vmem [thread:$0]  %s18, 256, %s20, [#allocation4], 128, 128, 8
    $region5: #{tpu_custom_call.1} parent=1 // pred_fallthru
      _
    // Predicated region
    $region6: #{tpu_custom_call.1} parent=1 // pred_check
      _
    $region7: #{tpu_custom_call.1} parent=1 // pred_check_branch
      %27 = sbr.rel (0) target = $region9
    $region8: #{tpu_custom_call.1} parent=1 // pred_region
      %29 = vsyncadd [#allocation7], 0
      %s30 = sshll.u32 %s1, 4
      %s31 = int_to_ptr.hbm [resolvable:$true] %s30
      %s32 = sshll.u32 [#allocation6], 4
      %s33 = int_to_ptr.vmem [resolvable:$true] %s32
      %38 = dma.hbm_to_vmem [thread:$0]  %s31, 512, %s33, [#allocation7], 128, 128, 8
    $region9: #{tpu_custom_call.1} parent=1 // pred_fallthru
      _
    // Predicated region
    $region10: #{tpu_custom_call.1} parent=1 // pred_check
      _
    $region11: #{tpu_custom_call.1} parent=1 // pred_check_branch
      %40 = sbr.rel (0) target = $region13
    $region12: #{tpu_custom_call.1} parent=1 // pred_region
      _
    $region13: #{tpu_custom_call.1} parent=1 // pred_fallthru
      _
    // Predicated region
    $region14: #{tpu_custom_call.1} parent=1 // pred_check
      _
    $region15: #{tpu_custom_call.1} parent=1 // pred_check_branch
      %42 = sbr.rel (0) target = $region17
    $region16: #{tpu_custom_call.1} parent=1 // pred_region
      _
    $region17: #{tpu_custom_call.1} parent=1 // pred_fallthru
      _
    // Predicated region
    $region18: #{tpu_custom_call.1} parent=1 // pred_check
      _
    $region19: #{tpu_custom_call.1} parent=1 // pred_check_branch
      %44 = sbr.rel (0) target = $region21
    $region20: #{tpu_custom_call.1} parent=1 // pred_region
      %46 = dma.done [#allocation4], 256
    $region21: #{tpu_custom_call.1} parent=1 // pred_fallthru
      _
    // Predicated region
    $region22: #{tpu_custom_call.1} parent=1 // pred_check
      _
    $region23: #{tpu_custom_call.1} parent=1 // pred_check_branch
      %48 = sbr.rel (0) target = $region25
    $region24: #{tpu_custom_call.1} parent=1 // pred_region
      %50 = dma.done [#allocation7], 512
    $region25: #{tpu_custom_call.1} parent=1 // pred_fallthru
      _
    %v51 = vld [vmem:[#allocation3] sm:$0xff]
    %v52 = vld [vmem:[#allocation3 + $0x8] sm:$0xff]
    %v53 = vld [vmem:[#allocation6] sm:$0xff]
    %v54 = vld [vmem:[#allocation6 + $0x8] sm:$0xff]
    %v55 = vld [vmem:[#allocation6 + $0x10] sm:$0xff]
    %v56 = vld [vmem:[#allocation6 + $0x18] sm:$0xff]
    %v57 = vld [vmem:[%s2] sm:$0x1]
    %v59 = vperm.slane %v57, 0
    %vm61 = vcmask 261120
    %v63 = vsel %vm61, %v51, 0
    %v66 = vsel %vm61, %v52, 0
    %68 = vmatpush.msra.mxu0 0.0
    %69 = vmatpush.msra.mxu0 0.0
    %70 = vmatpush.msra.mxu0 0.0
    %71 = vmatpush.msra.mxu0 0.0
    %72 = vmatpush.msra.mxu0 0.0
    %73 = vmatpush.msra.mxu0 0.0
    %74 = vmatpush.msra.mxu0 0.0
    %75 = vmatpush.msra.mxu0 0.0
    %76 = vmatpush.msra.mxu0 0.0
    %77 = vmatpush.msra.mxu0 0.0
    %78 = vmatpush.msra.mxu0 0.0
    %79 = vmatpush.msra.mxu0 0.0
    %80 = vmatpush.msra.mxu0 %v56
    %81 = vmatpush.msra.mxu0 %v55
    %82 = vmatpush.msra.mxu0 %v54
    %83 = vmatpush.msra.mxu0 %v53
    %84 = vmatmul.f32.gmra.mxu0 %v63
    %v85 = vpop.f32.mrf.mxu0
    %v86 = vadd.f32 %v59, %v85
    %87 = vmatmul.f32.gmra.mxu0 %v66
    %v88 = vpop.f32.mrf.mxu0
    %v89 = vadd.f32 %v59, %v88
    %90 = vdwg.mxu0
    %s91 = sld [smem:[#allocation2]]
    %s92 = ssub.f32 0.0, %s91
    %v93 = vstv %s92
    %v94 = vmul.f32 %v93, %v86
    %v95 = vmul.f32 %v93, %v89
    %v96 = vmul.f32 %v94, 1.442695
    %v97 = vpow.pop %v96
    %v98 = vmul.f32 %v95, 1.442695
    %v99 = vpow.pop %v98
    %v100 = vadd.f32 %v97, 1.0
    %v101 = vadd.f32 %v99, 1.0
    %v102 = vrcp.pop %v100
    %v103 = vmul.f32 %v100, %v102
    %v104 = vsub.f32 1.0, %v103
    %v105 = vmul.f32 %v102, %v104
    %v106 = vadd.f32 %v102, %v105
    %vm107 = vweird.f32 %v100
    %vm108 = vweird.f32 %v102
    %vm109 = vmor %vm107, %vm108
    %v110 = vsel %vm109, %v102, %v106
    %v111 = vand.u32 2147483647, %v100
    %vm112 = vcmp.eq.f32.partialorder %v111, 8.507059e+37
    %v113 = vand.u32 %v100, 2147483648
    %v114 = vor.u32 1.1754944e-38, %v113
    %v115 = vsel %vm112, %v114, %v110
    %v116 = vmul.f32 1.0, %v115
    %v117 = vrcp.pop %v101
    %v118 = vmul.f32 %v101, %v117
    %v119 = vsub.f32 1.0, %v118
    %v120 = vmul.f32 %v117, %v119
    %v121 = vadd.f32 %v117, %v120
    %vm122 = vweird.f32 %v101
    %vm123 = vweird.f32 %v117
    %vm124 = vmor %vm122, %vm123
    %v125 = vsel %vm124, %v117, %v121
    %v126 = vand.u32 2147483647, %v101
    %vm127 = vcmp.eq.f32.partialorder %v126, 8.507059e+37
    %v128 = vand.u32 %v101, 2147483648
    %v129 = vor.u32 1.1754944e-38, %v128
    %v130 = vsel %vm127, %v129, %v125
    %v131 = vmul.f32 1.0, %v130
    %v132 = vmul.f32 %v86, %v116
    %v133 = vmul.f32 %v89, %v131
    %136 = vrot.lane.b32.xlu0 %v86, 96
    %v137 = vpop.permute.xlu0 %136
    %138 = vrot.lane.b32.xlu0 %v89, 96
    %v139 = vpop.permute.xlu0 %138
    %v142 = vmul.f32 %v132, %v137
    %v143 = vmul.f32 %v133, %v139
    %144 = vst.msk [vmem:[#allocation8] sm:$0xff] %vm61, %v142
    %145 = vst.msk [vmem:[#allocation8 + $0x8] sm:$0xff] %vm61, %v143
    // Predicated region
    $region26: #{tpu_custom_call.1} parent=1 // pred_check
      _
    $region27: #{tpu_custom_call.1} parent=1 // pred_check_branch
      %147 = sbr.rel (0) target = $region29
    $region28: #{tpu_custom_call.1} parent=1 // pred_region
      %149 = vsyncadd [#allocation5], 0
      %s150 = sshll.u32 [#allocation8], 4
      %s151 = int_to_ptr.vmem [resolvable:$true] %s150
      %s152 = sshll.u32 %s4, 4
      %s153 = int_to_ptr.hbm [resolvable:$true] %s152
      %158 = dma.vmem_to_hbm [thread:$0]  %s151, 256, %s153, [#allocation5], 128, 128, 8
    $region29: #{tpu_custom_call.1} parent=1 // pred_fallthru
      _
    // Predicated region
    $region30: #{tpu_custom_call.1} parent=1 // pred_check
      _
    $region31: #{tpu_custom_call.1} parent=1 // pred_check_branch
      %160 = sbr.rel (0) target = $region33
    $region32: #{tpu_custom_call.1} parent=1 // pred_region
      %162 = dma.done [#allocation5], 256
    $region33: #{tpu_custom_call.1} parent=1 // pred_fallthru
      _
    %163 = vsyncpa [#allocation4], 1
    %164 = vsyncpa [#allocation7], 1
    %165 = vsyncpa [#allocation5], 1

</llo_original>
